<compile_context>
chip_gen: v5e
topology: v5e:2x2
jax: 0.10.0
libtpu: 0.0.40
codegen_flags: <defaults>
</compile_context>

<pallas_src>
import functools
import math

import jax
import jax.numpy as jnp
from jax.experimental import pallas as pl
from jax.experimental.pallas import tpu as pltpu

_HALF_LOG_2PI = 0.5 * math.log(2.0 * math.pi)
_SHIFT = 8  # recurrence shift so the asymptotic series is accurate (args >= 1 always)


def _lgamma_digamma(x):
    """Fused log-gamma + digamma for x >= ~0.5 (f32).

    Uses an 8-step recurrence shift followed by Stirling / asymptotic series.
    EUP ops per call: 2 logs (shift product, split in two to avoid f32 overflow
    for alpha up to ~1e9), 1 log (log z), 1 reciprocal (1/z), 4 divisions
    (paired digamma shift) — ~8 EUP ops vs ~18 for separate naive helpers.
    """
    # Shift products (split into 2x4 terms to keep f32 range safe).
    p0 = x * (x + 1.0) * (x + 2.0) * (x + 3.0)
    p1 = (x + 4.0) * (x + 5.0) * (x + 6.0) * (x + 7.0)
    lg_shift = jnp.log(p0) + jnp.log(p1)

    # Paired reciprocals: 1/(x+k) + 1/(x+k+1) = (2x+2k+1)/((x+k)(x+k+1)).
    dg_shift = ((2.0 * x + 1.0) / (x * (x + 1.0))
                + (2.0 * x + 5.0) / ((x + 2.0) * (x + 3.0))
                + (2.0 * x + 9.0) / ((x + 4.0) * (x + 5.0))
                + (2.0 * x + 13.0) / ((x + 6.0) * (x + 7.0)))

    z = x + float(_SHIFT)
    zi = 1.0 / z
    zi2 = zi * zi
    log_z = jnp.log(z)

    lg_series = zi * (1.0 / 12.0 + zi2 * (-1.0 / 360.0 + zi2 * (1.0 / 1260.0)))
    lgamma = (z - 0.5) * log_z - z + _HALF_LOG_2PI + lg_series - lg_shift

    dg_tail = zi2 * (1.0 / 12.0 - zi2 * (1.0 / 120.0 - zi2 * (1.0 / 252.0)))
    digamma = log_z - 0.5 * zi - dg_tail - dg_shift

    return lgamma, digamma


def _edl_loss_kernel(y_ref, alpha_ref, out_ref, *, num_classes, coef):
    # Blocks are (C, TILE_N): batch on lanes, classes on sublanes.
    y = y_ref[...].astype(jnp.float32)          # (C, TN)
    alpha = alpha_ref[...].astype(jnp.float32)  # (C, TN)

    # A term (func = log).  Class-axis reductions are sublane reductions.
    s = jnp.sum(alpha, axis=0, keepdims=True)                         # (1, TN)
    a_term = jnp.sum(y * (jnp.log(s) - jnp.log(alpha)),
                     axis=0, keepdims=True)                           # (1, TN)

    # KL(Dir(kl_alpha) || Dir(1)).
    kl_alpha = (alpha - 1.0) * (1.0 - y) + 1.0                        # (C, TN)
    sum_ka = jnp.sum(kl_alpha, axis=0, keepdims=True)                 # (1, TN)

    lg_ka, dg_ka = _lgamma_digamma(kl_alpha)                          # (C, TN) each
    lg_ska, dg_ska = _lgamma_digamma(sum_ka)                          # (1, TN) each

    lgamma_c = float(math.lgamma(float(num_classes)))  # lgamma(sum ones); sum lgamma(ones) = 0
    first = lg_ska - jnp.sum(lg_ka, axis=0, keepdims=True) - lgamma_c
    second = jnp.sum((kl_alpha - 1.0) * (dg_ka - dg_ska),
                     axis=0, keepdims=True)
    kl = first + second                                               # (1, TN)

    out_ref[...] = a_term + coef * kl                                 # lane-dense (1, TN)


def edl_loss(y, alpha, epoch_num, *, num_classes, annealing_step, tile_n=2048):
    """Pallas EDLLoss forward.  y, alpha: (N, C).  Returns (N, 1) float32."""
    n, c = y.shape
    assert alpha.shape == (n, c) and c == num_classes

    # Compile-time annealing coefficient (epoch_num / annealing_step are Python scalars).
    coef = min(1.0, float(epoch_num) / float(annealing_step))

    # Transpose so batch maps to lanes; cast happens inside the kernel (no wrapper astype).
    y_t = jnp.transpose(y)          # (C, N)
    alpha_t = jnp.transpose(alpha)  # (C, N)

    # Lane-aligned tile: multiple of 128, capped at tile_n, >= padded batch if small.
    n_up128 = -(-n // 128) * 128
    tile = min(max(128, tile_n), n_up128)
    tile = -(-tile // 128) * 128
    n_pad = -(-n // tile) * tile
    pad = n_pad - n
    if pad:
        # Pad alpha with 1.0 (keeps all special-function arguments >= 1); y with 0.
        y_t = jnp.pad(y_t, ((0, 0), (0, pad)))
        alpha_t = jnp.pad(alpha_t, ((0, 0), (0, pad)), constant_values=1.0)

    kernel = functools.partial(_edl_loss_kernel, num_classes=num_classes, coef=coef)

    out = pl.pallas_call(
        kernel,
        out_shape=jax.ShapeDtypeStruct((1, n_pad), jnp.float32),
        grid=(n_pad // tile,),
        in_specs=[
            pl.BlockSpec((c, tile), lambda i: (0, i)),   # y   (C on sublanes, batch on lanes)
            pl.BlockSpec((c, tile), lambda i: (0, i)),   # alpha
        ],
        out_specs=pl.BlockSpec((1, tile), lambda i: (0, i)),   # lane-dense output slab
        compiler_params=pltpu.CompilerParams(
            dimension_semantics=("parallel",)),
    )(y_t, alpha_t)

    return out[0, :n].reshape(n, 1)


def _edl_loss_ref(y, alpha, epoch_num, *, num_classes, annealing_step):
    """Pure-JAX reference mirroring the PyTorch module (func = log, weights = None)."""
    from jax.scipy.special import gammaln, digamma
    y = y.astype(jnp.float32)
    alpha = alpha.astype(jnp.float32)
    s = jnp.sum(alpha, axis=1, keepdims=True)
    a_term = jnp.sum(y * (jnp.log(s) - jnp.log(alpha)), axis=1, keepdims=True)
    coef = min(1.0, float(epoch_num) / float(annealing_step))
    kl_alpha = (alpha - 1.0) * (1.0 - y) + 1.0
    sum_ka = jnp.sum(kl_alpha, axis=1, keepdims=True)
    first = (gammaln(sum_ka)
             - jnp.sum(gammaln(kl_alpha), axis=1, keepdims=True)
             - gammaln(jnp.float32(num_classes)))
    second = jnp.sum((kl_alpha - 1.0) * (digamma(kl_alpha) - digamma(sum_ka)),
                     axis=1, keepdims=True)
    return a_term + coef * (first + second)


if __name__ == "__main__":
    num_classes = 4
    annealing_step = 10
    epoch_num = 3
    batch = 16

    key = jax.random.PRNGKey(0)
    k_lbl, k_ev = jax.random.split(key)

    labels = jax.random.randint(k_lbl, (batch,), 0, num_classes)
    y = jax.nn.one_hot(labels, num_classes, dtype=jnp.float32)            # (N, C)
    evidence = jax.random.uniform(k_ev, (batch, num_classes),
                                  dtype=jnp.float32, minval=0.0, maxval=3.0)
    alpha = evidence + 1.0                                                # (N, C), >= 1

    out = edl_loss(y, alpha, epoch_num,
                   num_classes=num_classes, annealing_step=annealing_step)
    out = jax.block_until_ready(out)

    ref = _edl_loss_ref(y, alpha, epoch_num,
                        num_classes=num_classes, annealing_step=annealing_step)
    assert out.shape == (batch, 1)
    assert jnp.allclose(out, ref, atol=1e-3, rtol=1e-3), (out, ref)

    print("KERNEL_OK")
</pallas_src>

<mosaic_0001>
module attributes {stable_mosaic.version = 11 : i64} {
  func.func @_edl_loss_kernel(%arg0: i32, %arg1: memref<4x128xf32, #tpu.memory_space<vmem>>, %arg2: memref<4x128xf32, #tpu.memory_space<vmem>>, %arg3: memref<1x128xf32, #tpu.memory_space<vmem>>) attributes {dimension_semantics = [#tpu.dimension_semantics<parallel>], iteration_bounds = array<i64: 1>, scalar_prefetch = 0 : i64, scratch_operands = 0 : i64, tpu.core_type = #tpu.core_type<tc>, window_params = [{transform_indices = @transform_0, window_bounds = array<i64: 4, 128>}, {transform_indices = @transform_1, window_bounds = array<i64: 4, 128>}, {transform_indices = @transform_2, window_bounds = array<i64: 1, 128>}]} {
    %c0 = arith.constant 0 : index
    %c0_0 = arith.constant 0 : index
    %0 = vector.load %arg1[%c0, %c0_0] : memref<4x128xf32, #tpu.memory_space<vmem>>, vector<4x128xf32>
    %c0_1 = arith.constant 0 : index
    %c0_2 = arith.constant 0 : index
    %1 = vector.load %arg2[%c0_1, %c0_2] : memref<4x128xf32, #tpu.memory_space<vmem>>, vector<4x128xf32>
    %cst = arith.constant dense<0.000000e+00> : vector<128xf32>
    %2 = vector.multi_reduction <add>, %1, %cst [0] : vector<4x128xf32> to vector<128xf32>
    %3 = vector.shape_cast %2 : vector<128xf32> to vector<1x128xf32>
    %4 = math.log %3 : vector<1x128xf32>
    %5 = math.log %1 : vector<4x128xf32>
    %6 = vector.broadcast %4 : vector<1x128xf32> to vector<4x128xf32>
    %7 = arith.subf %6, %5 : vector<4x128xf32>
    %8 = arith.mulf %0, %7 : vector<4x128xf32>
    %cst_3 = arith.constant dense<0.000000e+00> : vector<128xf32>
    %9 = vector.multi_reduction <add>, %8, %cst_3 [0] : vector<4x128xf32> to vector<128xf32>
    %10 = vector.shape_cast %9 : vector<128xf32> to vector<1x128xf32>
    %cst_4 = arith.constant 1.000000e+00 : f32
    %11 = vector.broadcast %cst_4 : f32 to vector<4x128xf32>
    %12 = arith.subf %1, %11 : vector<4x128xf32>
    %cst_5 = arith.constant 1.000000e+00 : f32
    %13 = vector.broadcast %cst_5 : f32 to vector<4x128xf32>
    %14 = arith.subf %13, %0 : vector<4x128xf32>
    %15 = arith.mulf %12, %14 : vector<4x128xf32>
    %cst_6 = arith.constant 1.000000e+00 : f32
    %16 = vector.broadcast %cst_6 : f32 to vector<4x128xf32>
    %17 = arith.addf %15, %16 : vector<4x128xf32>
    %cst_7 = arith.constant dense<0.000000e+00> : vector<128xf32>
    %18 = vector.multi_reduction <add>, %17, %cst_7 [0] : vector<4x128xf32> to vector<128xf32>
    %19 = vector.shape_cast %18 : vector<128xf32> to vector<1x128xf32>
    %cst_8 = arith.constant 1.000000e+00 : f32
    %20 = vector.broadcast %cst_8 : f32 to vector<4x128xf32>
    %21 = arith.addf %17, %20 : vector<4x128xf32>
    %22 = arith.mulf %17, %21 : vector<4x128xf32>
    %cst_9 = arith.constant 2.000000e+00 : f32
    %23 = vector.broadcast %cst_9 : f32 to vector<4x128xf32>
    %24 = arith.addf %17, %23 : vector<4x128xf32>
    %25 = arith.mulf %22, %24 : vector<4x128xf32>
    %cst_10 = arith.constant 3.000000e+00 : f32
    %26 = vector.broadcast %cst_10 : f32 to vector<4x128xf32>
    %27 = arith.addf %17, %26 : vector<4x128xf32>
    %28 = arith.mulf %25, %27 : vector<4x128xf32>
    %cst_11 = arith.constant 4.000000e+00 : f32
    %29 = vector.broadcast %cst_11 : f32 to vector<4x128xf32>
    %30 = arith.addf %17, %29 : vector<4x128xf32>
    %cst_12 = arith.constant 5.000000e+00 : f32
    %31 = vector.broadcast %cst_12 : f32 to vector<4x128xf32>
    %32 = arith.addf %17, %31 : vector<4x128xf32>
    %33 = arith.mulf %30, %32 : vector<4x128xf32>
    %cst_13 = arith.constant 6.000000e+00 : f32
    %34 = vector.broadcast %cst_13 : f32 to vector<4x128xf32>
    %35 = arith.addf %17, %34 : vector<4x128xf32>
    %36 = arith.mulf %33, %35 : vector<4x128xf32>
    %cst_14 = arith.constant 7.000000e+00 : f32
    %37 = vector.broadcast %cst_14 : f32 to vector<4x128xf32>
    %38 = arith.addf %17, %37 : vector<4x128xf32>
    %39 = arith.mulf %36, %38 : vector<4x128xf32>
    %40 = math.log %28 : vector<4x128xf32>
    %41 = math.log %39 : vector<4x128xf32>
    %42 = arith.addf %40, %41 : vector<4x128xf32>
    %cst_15 = arith.constant 2.000000e+00 : f32
    %43 = vector.broadcast %cst_15 : f32 to vector<4x128xf32>
    %44 = arith.mulf %43, %17 : vector<4x128xf32>
    %cst_16 = arith.constant 1.000000e+00 : f32
    %45 = vector.broadcast %cst_16 : f32 to vector<4x128xf32>
    %46 = arith.addf %44, %45 : vector<4x128xf32>
    %cst_17 = arith.constant 1.000000e+00 : f32
    %47 = vector.broadcast %cst_17 : f32 to vector<4x128xf32>
    %48 = arith.addf %17, %47 : vector<4x128xf32>
    %49 = arith.mulf %17, %48 : vector<4x128xf32>
    %50 = arith.divf %46, %49 : vector<4x128xf32>
    %cst_18 = arith.constant 2.000000e+00 : f32
    %51 = vector.broadcast %cst_18 : f32 to vector<4x128xf32>
    %52 = arith.mulf %51, %17 : vector<4x128xf32>
    %cst_19 = arith.constant 5.000000e+00 : f32
    %53 = vector.broadcast %cst_19 : f32 to vector<4x128xf32>
    %54 = arith.addf %52, %53 : vector<4x128xf32>
    %cst_20 = arith.constant 2.000000e+00 : f32
    %55 = vector.broadcast %cst_20 : f32 to vector<4x128xf32>
    %56 = arith.addf %17, %55 : vector<4x128xf32>
    %cst_21 = arith.constant 3.000000e+00 : f32
    %57 = vector.broadcast %cst_21 : f32 to vector<4x128xf32>
    %58 = arith.addf %17, %57 : vector<4x128xf32>
    %59 = arith.mulf %56, %58 : vector<4x128xf32>
    %60 = arith.divf %54, %59 : vector<4x128xf32>
    %61 = arith.addf %50, %60 : vector<4x128xf32>
    %cst_22 = arith.constant 2.000000e+00 : f32
    %62 = vector.broadcast %cst_22 : f32 to vector<4x128xf32>
    %63 = arith.mulf %62, %17 : vector<4x128xf32>
    %cst_23 = arith.constant 9.000000e+00 : f32
    %64 = vector.broadcast %cst_23 : f32 to vector<4x128xf32>
    %65 = arith.addf %63, %64 : vector<4x128xf32>
    %cst_24 = arith.constant 4.000000e+00 : f32
    %66 = vector.broadcast %cst_24 : f32 to vector<4x128xf32>
    %67 = arith.addf %17, %66 : vector<4x128xf32>
    %cst_25 = arith.constant 5.000000e+00 : f32
    %68 = vector.broadcast %cst_25 : f32 to vector<4x128xf32>
    %69 = arith.addf %17, %68 : vector<4x128xf32>
    %70 = arith.mulf %67, %69 : vector<4x128xf32>
    %71 = arith.divf %65, %70 : vector<4x128xf32>
    %72 = arith.addf %61, %71 : vector<4x128xf32>
    %cst_26 = arith.constant 2.000000e+00 : f32
    %73 = vector.broadcast %cst_26 : f32 to vector<4x128xf32>
    %74 = arith.mulf %73, %17 : vector<4x128xf32>
    %cst_27 = arith.constant 1.300000e+01 : f32
    %75 = vector.broadcast %cst_27 : f32 to vector<4x128xf32>
    %76 = arith.addf %74, %75 : vector<4x128xf32>
    %cst_28 = arith.constant 6.000000e+00 : f32
    %77 = vector.broadcast %cst_28 : f32 to vector<4x128xf32>
    %78 = arith.addf %17, %77 : vector<4x128xf32>
    %cst_29 = arith.constant 7.000000e+00 : f32
    %79 = vector.broadcast %cst_29 : f32 to vector<4x128xf32>
    %80 = arith.addf %17, %79 : vector<4x128xf32>
    %81 = arith.mulf %78, %80 : vector<4x128xf32>
    %82 = arith.divf %76, %81 : vector<4x128xf32>
    %83 = arith.addf %72, %82 : vector<4x128xf32>
    %cst_30 = arith.constant 8.000000e+00 : f32
    %84 = vector.broadcast %cst_30 : f32 to vector<4x128xf32>
    %85 = arith.addf %17, %84 : vector<4x128xf32>
    %cst_31 = arith.constant 1.000000e+00 : f32
    %86 = vector.broadcast %cst_31 : f32 to vector<4x128xf32>
    %87 = arith.divf %86, %85 : vector<4x128xf32>
    %88 = arith.mulf %87, %87 : vector<4x128xf32>
    %89 = math.log %85 : vector<4x128xf32>
    %cst_32 = arith.constant 7.93650805E-4 : f32
    %90 = vector.broadcast %cst_32 : f32 to vector<4x128xf32>
    %91 = arith.mulf %88, %90 : vector<4x128xf32>
    %cst_33 = arith.constant -0.00277777785 : f32
    %92 = vector.broadcast %cst_33 : f32 to vector<4x128xf32>
    %93 = arith.addf %92, %91 : vector<4x128xf32>
    %94 = arith.mulf %88, %93 : vector<4x128xf32>
    %cst_34 = arith.constant 0.0833333358 : f32
    %95 = vector.broadcast %cst_34 : f32 to vector<4x128xf32>
    %96 = arith.addf %95, %94 : vector<4x128xf32>
    %97 = arith.mulf %87, %96 : vector<4x128xf32>
    %cst_35 = arith.constant 5.000000e-01 : f32
    %98 = vector.broadcast %cst_35 : f32 to vector<4x128xf32>
    %99 = arith.subf %85, %98 : vector<4x128xf32>
    %100 = arith.mulf %99, %89 : vector<4x128xf32>
    %101 = arith.subf %100, %85 : vector<4x128xf32>
    %cst_36 = arith.constant 0.918938517 : f32
    %102 = vector.broadcast %cst_36 : f32 to vector<4x128xf32>
    %103 = arith.addf %101, %102 : vector<4x128xf32>
    %104 = arith.addf %103, %97 : vector<4x128xf32>
    %105 = arith.subf %104, %42 : vector<4x128xf32>
    %cst_37 = arith.constant 0.0039682542 : f32
    %106 = vector.broadcast %cst_37 : f32 to vector<4x128xf32>
    %107 = arith.mulf %88, %106 : vector<4x128xf32>
    %cst_38 = arith.constant 0.00833333377 : f32
    %108 = vector.broadcast %cst_38 : f32 to vector<4x128xf32>
    %109 = arith.subf %108, %107 : vector<4x128xf32>
    %110 = arith.mulf %88, %109 : vector<4x128xf32>
    %cst_39 = arith.constant 0.0833333358 : f32
    %111 = vector.broadcast %cst_39 : f32 to vector<4x128xf32>
    %112 = arith.subf %111, %110 : vector<4x128xf32>
    %113 = arith.mulf %88, %112 : vector<4x128xf32>
    %cst_40 = arith.constant 5.000000e-01 : f32
    %114 = vector.broadcast %cst_40 : f32 to vector<4x128xf32>
    %115 = arith.mulf %114, %87 : vector<4x128xf32>
    %116 = arith.subf %89, %115 : vector<4x128xf32>
    %117 = arith.subf %116, %113 : vector<4x128xf32>
    %118 = arith.subf %117, %83 : vector<4x128xf32>
    %cst_41 = arith.constant 1.000000e+00 : f32
    %119 = vector.broadcast %cst_41 : f32 to vector<1x128xf32>
    %120 = arith.addf %19, %119 : vector<1x128xf32>
    %121 = arith.mulf %19, %120 : vector<1x128xf32>
    %cst_42 = arith.constant 2.000000e+00 : f32
    %122 = vector.broadcast %cst_42 : f32 to vector<1x128xf32>
    %123 = arith.addf %19, %122 : vector<1x128xf32>
    %124 = arith.mulf %121, %123 : vector<1x128xf32>
    %cst_43 = arith.constant 3.000000e+00 : f32
    %125 = vector.broadcast %cst_43 : f32 to vector<1x128xf32>
    %126 = arith.addf %19, %125 : vector<1x128xf32>
    %127 = arith.mulf %124, %126 : vector<1x128xf32>
    %cst_44 = arith.constant 4.000000e+00 : f32
    %128 = vector.broadcast %cst_44 : f32 to vector<1x128xf32>
    %129 = arith.addf %19, %128 : vector<1x128xf32>
    %cst_45 = arith.constant 5.000000e+00 : f32
    %130 = vector.broadcast %cst_45 : f32 to vector<1x128xf32>
    %131 = arith.addf %19, %130 : vector<1x128xf32>
    %132 = arith.mulf %129, %131 : vector<1x128xf32>
    %cst_46 = arith.constant 6.000000e+00 : f32
    %133 = vector.broadcast %cst_46 : f32 to vector<1x128xf32>
    %134 = arith.addf %19, %133 : vector<1x128xf32>
    %135 = arith.mulf %132, %134 : vector<1x128xf32>
    %cst_47 = arith.constant 7.000000e+00 : f32
    %136 = vector.broadcast %cst_47 : f32 to vector<1x128xf32>
    %137 = arith.addf %19, %136 : vector<1x128xf32>
    %138 = arith.mulf %135, %137 : vector<1x128xf32>
    %139 = math.log %127 : vector<1x128xf32>
    %140 = math.log %138 : vector<1x128xf32>
    %141 = arith.addf %139, %140 : vector<1x128xf32>
    %cst_48 = arith.constant 2.000000e+00 : f32
    %142 = vector.broadcast %cst_48 : f32 to vector<1x128xf32>
    %143 = arith.mulf %142, %19 : vector<1x128xf32>
    %cst_49 = arith.constant 1.000000e+00 : f32
    %144 = vector.broadcast %cst_49 : f32 to vector<1x128xf32>
    %145 = arith.addf %143, %144 : vector<1x128xf32>
    %cst_50 = arith.constant 1.000000e+00 : f32
    %146 = vector.broadcast %cst_50 : f32 to vector<1x128xf32>
    %147 = arith.addf %19, %146 : vector<1x128xf32>
    %148 = arith.mulf %19, %147 : vector<1x128xf32>
    %149 = arith.divf %145, %148 : vector<1x128xf32>
    %cst_51 = arith.constant 2.000000e+00 : f32
    %150 = vector.broadcast %cst_51 : f32 to vector<1x128xf32>
    %151 = arith.mulf %150, %19 : vector<1x128xf32>
    %cst_52 = arith.constant 5.000000e+00 : f32
    %152 = vector.broadcast %cst_52 : f32 to vector<1x128xf32>
    %153 = arith.addf %151, %152 : vector<1x128xf32>
    %cst_53 = arith.constant 2.000000e+00 : f32
    %154 = vector.broadcast %cst_53 : f32 to vector<1x128xf32>
    %155 = arith.addf %19, %154 : vector<1x128xf32>
    %cst_54 = arith.constant 3.000000e+00 : f32
    %156 = vector.broadcast %cst_54 : f32 to vector<1x128xf32>
    %157 = arith.addf %19, %156 : vector<1x128xf32>
    %158 = arith.mulf %155, %157 : vector<1x128xf32>
    %159 = arith.divf %153, %158 : vector<1x128xf32>
    %160 = arith.addf %149, %159 : vector<1x128xf32>
    %cst_55 = arith.constant 2.000000e+00 : f32
    %161 = vector.broadcast %cst_55 : f32 to vector<1x128xf32>
    %162 = arith.mulf %161, %19 : vector<1x128xf32>
    %cst_56 = arith.constant 9.000000e+00 : f32
    %163 = vector.broadcast %cst_56 : f32 to vector<1x128xf32>
    %164 = arith.addf %162, %163 : vector<1x128xf32>
    %cst_57 = arith.constant 4.000000e+00 : f32
    %165 = vector.broadcast %cst_57 : f32 to vector<1x128xf32>
    %166 = arith.addf %19, %165 : vector<1x128xf32>
    %cst_58 = arith.constant 5.000000e+00 : f32
    %167 = vector.broadcast %cst_58 : f32 to vector<1x128xf32>
    %168 = arith.addf %19, %167 : vector<1x128xf32>
    %169 = arith.mulf %166, %168 : vector<1x128xf32>
    %170 = arith.divf %164, %169 : vector<1x128xf32>
    %171 = arith.addf %160, %170 : vector<1x128xf32>
    %cst_59 = arith.constant 2.000000e+00 : f32
    %172 = vector.broadcast %cst_59 : f32 to vector<1x128xf32>
    %173 = arith.mulf %172, %19 : vector<1x128xf32>
    %cst_60 = arith.constant 1.300000e+01 : f32
    %174 = vector.broadcast %cst_60 : f32 to vector<1x128xf32>
    %175 = arith.addf %173, %174 : vector<1x128xf32>
    %cst_61 = arith.constant 6.000000e+00 : f32
    %176 = vector.broadcast %cst_61 : f32 to vector<1x128xf32>
    %177 = arith.addf %19, %176 : vector<1x128xf32>
    %cst_62 = arith.constant 7.000000e+00 : f32
    %178 = vector.broadcast %cst_62 : f32 to vector<1x128xf32>
    %179 = arith.addf %19, %178 : vector<1x128xf32>
    %180 = arith.mulf %177, %179 : vector<1x128xf32>
    %181 = arith.divf %175, %180 : vector<1x128xf32>
    %182 = arith.addf %171, %181 : vector<1x128xf32>
    %cst_63 = arith.constant 8.000000e+00 : f32
    %183 = vector.broadcast %cst_63 : f32 to vector<1x128xf32>
    %184 = arith.addf %19, %183 : vector<1x128xf32>
    %cst_64 = arith.constant 1.000000e+00 : f32
    %185 = vector.broadcast %cst_64 : f32 to vector<1x128xf32>
    %186 = arith.divf %185, %184 : vector<1x128xf32>
    %187 = arith.mulf %186, %186 : vector<1x128xf32>
    %188 = math.log %184 : vector<1x128xf32>
    %cst_65 = arith.constant 7.93650805E-4 : f32
    %189 = vector.broadcast %cst_65 : f32 to vector<1x128xf32>
    %190 = arith.mulf %187, %189 : vector<1x128xf32>
    %cst_66 = arith.constant -0.00277777785 : f32
    %191 = vector.broadcast %cst_66 : f32 to vector<1x128xf32>
    %192 = arith.addf %191, %190 : vector<1x128xf32>
    %193 = arith.mulf %187, %192 : vector<1x128xf32>
    %cst_67 = arith.constant 0.0833333358 : f32
    %194 = vector.broadcast %cst_67 : f32 to vector<1x128xf32>
    %195 = arith.addf %194, %193 : vector<1x128xf32>
    %196 = arith.mulf %186, %195 : vector<1x128xf32>
    %cst_68 = arith.constant 5.000000e-01 : f32
    %197 = vector.broadcast %cst_68 : f32 to vector<1x128xf32>
    %198 = arith.subf %184, %197 : vector<1x128xf32>
    %199 = arith.mulf %198, %188 : vector<1x128xf32>
    %200 = arith.subf %199, %184 : vector<1x128xf32>
    %cst_69 = arith.constant 0.918938517 : f32
    %201 = vector.broadcast %cst_69 : f32 to vector<1x128xf32>
    %202 = arith.addf %200, %201 : vector<1x128xf32>
    %203 = arith.addf %202, %196 : vector<1x128xf32>
    %204 = arith.subf %203, %141 : vector<1x128xf32>
    %cst_70 = arith.constant 0.0039682542 : f32
    %205 = vector.broadcast %cst_70 : f32 to vector<1x128xf32>
    %206 = arith.mulf %187, %205 : vector<1x128xf32>
    %cst_71 = arith.constant 0.00833333377 : f32
    %207 = vector.broadcast %cst_71 : f32 to vector<1x128xf32>
    %208 = arith.subf %207, %206 : vector<1x128xf32>
    %209 = arith.mulf %187, %208 : vector<1x128xf32>
    %cst_72 = arith.constant 0.0833333358 : f32
    %210 = vector.broadcast %cst_72 : f32 to vector<1x128xf32>
    %211 = arith.subf %210, %209 : vector<1x128xf32>
    %212 = arith.mulf %187, %211 : vector<1x128xf32>
    %cst_73 = arith.constant 5.000000e-01 : f32
    %213 = vector.broadcast %cst_73 : f32 to vector<1x128xf32>
    %214 = arith.mulf %213, %186 : vector<1x128xf32>
    %215 = arith.subf %188, %214 : vector<1x128xf32>
    %216 = arith.subf %215, %212 : vector<1x128xf32>
    %217 = arith.subf %216, %182 : vector<1x128xf32>
    %cst_74 = arith.constant dense<0.000000e+00> : vector<128xf32>
    %218 = vector.multi_reduction <add>, %105, %cst_74 [0] : vector<4x128xf32> to vector<128xf32>
    %219 = vector.shape_cast %218 : vector<128xf32> to vector<1x128xf32>
    %220 = arith.subf %204, %219 : vector<1x128xf32>
    %cst_75 = arith.constant 1.79175949 : f32
    %221 = vector.broadcast %cst_75 : f32 to vector<1x128xf32>
    %222 = arith.subf %220, %221 : vector<1x128xf32>
    %cst_76 = arith.constant 1.000000e+00 : f32
    %223 = vector.broadcast %cst_76 : f32 to vector<4x128xf32>
    %224 = arith.subf %17, %223 : vector<4x128xf32>
    %225 = vector.broadcast %217 : vector<1x128xf32> to vector<4x128xf32>
    %226 = arith.subf %118, %225 : vector<4x128xf32>
    %227 = arith.mulf %224, %226 : vector<4x128xf32>
    %cst_77 = arith.constant dense<0.000000e+00> : vector<128xf32>
    %228 = vector.multi_reduction <add>, %227, %cst_77 [0] : vector<4x128xf32> to vector<128xf32>
    %229 = vector.shape_cast %228 : vector<128xf32> to vector<1x128xf32>
    %230 = arith.addf %222, %229 : vector<1x128xf32>
    %cst_78 = arith.constant 3.000000e-01 : f32
    %231 = vector.broadcast %cst_78 : f32 to vector<1x128xf32>
    %232 = arith.mulf %231, %230 : vector<1x128xf32>
    %233 = arith.addf %10, %232 : vector<1x128xf32>
    %c0_79 = arith.constant 0 : index
    %c0_80 = arith.constant 0 : index
    %234 = vector.load %arg3[%c0_79, %c0_80] : memref<1x128xf32, #tpu.memory_space<vmem>>, vector<1x128xf32>
    tpu.vector_store %arg3[%c0_79, %c0_80], %233 {strides = array<i32>} : memref<1x128xf32, #tpu.memory_space<vmem>>, vector<1x128xf32>,
    return
  }
  func.func @transform_0(%arg0: i32) -> (i32, i32) {
    %c0_i32 = arith.constant 0 : i32
    %c0_i32_0 = arith.constant 0 : i32
    return %c0_i32, %arg0 : i32, i32
  }
  func.func @transform_1(%arg0: i32) -> (i32, i32) {
    %c0_i32 = arith.constant 0 : i32
    %c0_i32_0 = arith.constant 0 : i32
    return %c0_i32, %arg0 : i32, i32
  }
  func.func @transform_2(%arg0: i32) -> (i32, i32) {
    %c0_i32 = arith.constant 0 : i32
    %c0_i32_0 = arith.constant 0 : i32
    return %c0_i32, %arg0 : i32, i32
  }
}

</mosaic_0001>

<llo_original>
// kernel: tpu_custom_call.1
$region0: #{tpu_custom_call.1}
  #allocation0 [shape = 'u32[]', space=smem, size = 0x4, offset = 0x4, fixed_abs, tag = 'smem constant byte address 0x4 - core index']
  #allocation1 [shape = 'u32[72,128]{1,0:T(1,128)}', space=vmem, size = 0x9000, scoped, tag = 'internal scratch']
  %s0 = inlined_call_operand.hbm [shape: f32[4,128], index: 0, kind: input, shape index: {}]
  %s1 = inlined_call_operand.hbm [shape: f32[4,128], index: 1, kind: input, shape index: {}]
  %s2 = inlined_call_operand.hbm [shape: f32[1,128], index: 2, kind: output, shape index: {}]
  %s3 = sld [smem:[#allocation0]]
  $region26: #{tpu_custom_call.1} parent=0
    _
  %s5 = ssub.s32 1, %s3
  %s6 = scalar_select 0, %s5, %s3
  $region1: #{tpu_custom_call.1} parent=0
    #allocation2 [shape = 'u8[2048]{0}', space=vmem, size = 0x800, scoped, tag = 'input window, operand 0, single buffered']
    #allocation3 [shape = 's32[1]{0}', space=sflag, size = 0x4, scoped, tag = 'scoped memory for tpu_custom_call.1']
    #allocation4 [shape = 's32[1]{0}', space=sflag, size = 0x4, scoped, tag = 'scoped memory for tpu_custom_call.1']
    #allocation5 [shape = 'u8[2048]{0}', space=vmem, size = 0x800, scoped, tag = 'input window, operand 1, single buffered']
    #allocation6 [shape = 's32[1]{0}', space=sflag, size = 0x4, scoped, tag = 'scoped memory for tpu_custom_call.1']
    #allocation7 [shape = 'u8[512]{0}', space=vmem, size = 0x400, scoped, tag = 'output window, operand 0, single buffered']
    %7 = vsyncpa [#allocation3], 0
    %8 = vsyncpa [#allocation6], 0
    %9 = vsyncpa [#allocation4], 0
    // Predicated region
    $region2: #{tpu_custom_call.1} parent=1 // pred_check
      _
    $region3: #{tpu_custom_call.1} parent=1 // pred_check_branch
      %11 = sbr.rel (0) target = $region5
    $region4: #{tpu_custom_call.1} parent=1 // pred_region
      %13 = vsyncadd [#allocation3], 0
      %s15 = sshll.u32 %s0, 4
      %s16 = int_to_ptr.hbm [resolvable:$true] %s15
      %s17 = sshll.u32 [#allocation2], 4
      %s18 = int_to_ptr.vmem [resolvable:$true] %s17
      %20 = dma.hbm_to_vmem [thread:$0]  %s16, 64, %s18, [#allocation3]
    $region5: #{tpu_custom_call.1} parent=1 // pred_fallthru
      _
    // Predicated region
    $region6: #{tpu_custom_call.1} parent=1 // pred_check
      _
    $region7: #{tpu_custom_call.1} parent=1 // pred_check_branch
      %22 = sbr.rel (0) target = $region9
    $region8: #{tpu_custom_call.1} parent=1 // pred_region
      %24 = vsyncadd [#allocation6], 0
      %s26 = sshll.u32 %s1, 4
      %s27 = int_to_ptr.hbm [resolvable:$true] %s26
      %s28 = sshll.u32 [#allocation5], 4
      %s29 = int_to_ptr.vmem [resolvable:$true] %s28
      %31 = dma.hbm_to_vmem [thread:$0]  %s27, 64, %s29, [#allocation6]
    $region9: #{tpu_custom_call.1} parent=1 // pred_fallthru
      _
    // Predicated region
    $region10: #{tpu_custom_call.1} parent=1 // pred_check
      _
    $region11: #{tpu_custom_call.1} parent=1 // pred_check_branch
      %33 = sbr.rel (0) target = $region13
    $region12: #{tpu_custom_call.1} parent=1 // pred_region
      %35 = dma.done [#allocation3], 64
    $region13: #{tpu_custom_call.1} parent=1 // pred_fallthru
      _
    // Predicated region
    $region14: #{tpu_custom_call.1} parent=1 // pred_check
      _
    $region15: #{tpu_custom_call.1} parent=1 // pred_check_branch
      %37 = sbr.rel (0) target = $region17
    $region16: #{tpu_custom_call.1} parent=1 // pred_region
      %39 = dma.done [#allocation6], 64
    $region17: #{tpu_custom_call.1} parent=1 // pred_fallthru
      _
    %v40 = vld [vmem:[#allocation2] sm:$0xf]
    %v41 = vld [vmem:[#allocation5] sm:$0xf]
    %vm42 = vcmask 1043456
    %v43 = vsel %vm42, %v41, 0.0
    %v44 = vrot.slane %v43, 4
    %v45 = vadd.f32 %v43, %v44
    %v46 = vrot.slane %v45, 2
    %v47 = vadd.f32 %v45, %v46
    %v48 = vrot.slane %v47, 1
    %v49 = vadd.f32 %v47, %v48
    %v50 = vlog2.pop %v49
    %v51 = vmul.f32 %v50, 0.6931472
    %v52 = vlog2.pop %v41
    %v53 = vmul.f32 %v52, 0.6931472
    %v54 = vsub.f32 %v51, %v53
    %v55 = vmul.f32 %v40, %v54
    %v56 = vsel %vm42, %v55, 0.0
    %v57 = vrot.slane %v56, 4
    %v58 = vadd.f32 %v56, %v57
    %v59 = vrot.slane %v58, 2
    %v60 = vadd.f32 %v58, %v59
    %v61 = vrot.slane %v60, 1
    %v62 = vadd.f32 %v60, %v61
    %v63 = vsub.f32 %v41, 1.0
    %v64 = vsub.f32 1.0, %v40
    %v65 = vmul.f32 %v63, %v64
    %v66 = vadd.f32 %v65, 1.0
    %v67 = vsel %vm42, %v66, 0.0
    %v68 = vrot.slane %v67, 4
    %v69 = vadd.f32 %v67, %v68
    %v70 = vrot.slane %v69, 2
    %v71 = vadd.f32 %v69, %v70
    %v72 = vrot.slane %v71, 1
    %v73 = vadd.f32 %v71, %v72
    %v74 = vadd.f32 %v66, 1.0
    %v75 = vmul.f32 %v66, %v74
    %v76 = vadd.f32 %v66, 2.0
    %v77 = vmul.f32 %v75, %v76
    %v78 = vadd.f32 %v66, 3.0
    %v79 = vmul.f32 %v77, %v78
    %v80 = vadd.f32 %v66, 4.0
    %v81 = vadd.f32 %v66, 5.0
    %v82 = vmul.f32 %v80, %v81
    %v83 = vadd.f32 %v66, 6.0
    %v84 = vmul.f32 %v82, %v83
    %v85 = vadd.f32 %v66, 7.0
    %v86 = vmul.f32 %v84, %v85
    %v87 = vlog2.pop %v79
    %v88 = vmul.f32 %v87, 0.6931472
    %v89 = vlog2.pop %v86
    %v90 = vmul.f32 %v89, 0.6931472
    %v91 = vadd.f32 %v88, %v90
    %v92 = vmul.f32 %v66, 2.0
    %v93 = vadd.f32 %v92, 1.0
    %v94 = vrcp.pop %v75
    %v95 = vmul.f32 %v75, %v94
    %v96 = vsub.f32 1.0, %v95
    %v97 = vmul.f32 %v94, %v96
    %v98 = vadd.f32 %v94, %v97
    %vm99 = vweird.f32 %v75
    %vm100 = vweird.f32 %v94
    %vm101 = vmor %vm99, %vm100
    %v102 = vsel %vm101, %v94, %v98
    %v103 = vand.u32 2147483647, %v75
    %vm104 = vcmp.eq.f32.partialorder %v103, 8.507059e+37
    %v105 = vand.u32 %v75, 2147483648
    %v106 = vor.u32 1.1754944e-38, %v105
    %v107 = vsel %vm104, %v106, %v102
    %v108 = vmul.f32 %v93, %v107
    %v109 = vadd.f32 %v92, 5.0
    %v110 = vmul.f32 %v76, %v78
    %v111 = vrcp.pop %v110
    %v112 = vmul.f32 %v110, %v111
    %v113 = vsub.f32 1.0, %v112
    %v114 = vmul.f32 %v111, %v113
    %v115 = vadd.f32 %v111, %v114
    %vm116 = vweird.f32 %v110
    %vm117 = vweird.f32 %v111
    %vm118 = vmor %vm116, %vm117
    %v119 = vsel %vm118, %v111, %v115
    %v120 = vand.u32 2147483647, %v110
    %vm121 = vcmp.eq.f32.partialorder %v120, 8.507059e+37
    %v122 = vand.u32 %v110, 2147483648
    %v123 = vor.u32 1.1754944e-38, %v122
    %v124 = vsel %vm121, %v123, %v119
    %v125 = vmul.f32 %v109, %v124
    %v126 = vadd.f32 %v108, %v125
    %v127 = vadd.f32 %v92, 9.0
    %v128 = vrcp.pop %v82
    %v129 = vmul.f32 %v82, %v128
    %v130 = vsub.f32 1.0, %v129
    %v131 = vmul.f32 %v128, %v130
    %v132 = vadd.f32 %v128, %v131
    %vm133 = vweird.f32 %v82
    %vm134 = vweird.f32 %v128
    %vm135 = vmor %vm133, %vm134
    %v136 = vsel %vm135, %v128, %v132
    %v137 = vand.u32 2147483647, %v82
    %vm138 = vcmp.eq.f32.partialorder %v137, 8.507059e+37
    %v139 = vand.u32 %v82, 2147483648
    %v140 = vor.u32 1.1754944e-38, %v139
    %v141 = vsel %vm138, %v140, %v136
    %v142 = vmul.f32 %v127, %v141
    %v143 = vadd.f32 %v126, %v142
    %v144 = vadd.f32 %v92, 13.0
    %v145 = vmul.f32 %v83, %v85
    %v146 = vrcp.pop %v145
    %v147 = vmul.f32 %v145, %v146
    %v148 = vsub.f32 1.0, %v147
    %v149 = vmul.f32 %v146, %v148
    %v150 = vadd.f32 %v146, %v149
    %vm151 = vweird.f32 %v145
    %vm152 = vweird.f32 %v146
    %vm153 = vmor %vm151, %vm152
    %v154 = vsel %vm153, %v146, %v150
    %v155 = vand.u32 2147483647, %v145
    %vm156 = vcmp.eq.f32.partialorder %v155, 8.507059e+37
    %v157 = vand.u32 %v145, 2147483648
    %v158 = vor.u32 1.1754944e-38, %v157
    %v159 = vsel %vm156, %v158, %v154
    %v160 = vmul.f32 %v144, %v159
    %v161 = vadd.f32 %v143, %v160
    %v162 = vadd.f32 %v66, 8.0
    %v163 = vrcp.pop %v162
    %v164 = vmul.f32 %v162, %v163
    %v165 = vsub.f32 1.0, %v164
    %v166 = vmul.f32 %v163, %v165
    %v167 = vadd.f32 %v163, %v166
    %vm168 = vweird.f32 %v162
    %vm169 = vweird.f32 %v163
    %vm170 = vmor %vm168, %vm169
    %v171 = vsel %vm170, %v163, %v167
    %v172 = vand.u32 2147483647, %v162
    %vm173 = vcmp.eq.f32.partialorder %v172, 8.507059e+37
    %v174 = vand.u32 %v162, 2147483648
    %v175 = vor.u32 1.1754944e-38, %v174
    %v176 = vsel %vm173, %v175, %v171
    %v177 = vmul.f32 1.0, %v176
    %v178 = vmul.f32 %v177, %v177
    %v179 = vlog2.pop %v162
    %v180 = vmul.f32 %v179, 0.6931472
    %v181 = vmul.f32 %v178, 0.0007936508
    %v182 = vadd.f32 %v181, -0.0027777778
    %v183 = vmul.f32 %v178, %v182
    %v184 = vadd.f32 %v183, 0.083333336
    %v185 = vmul.f32 %v177, %v184
    %v186 = vsub.f32 %v162, 0.5
    %v187 = vmul.f32 %v186, %v180
    %v188 = vsub.f32 %v187, %v162
    %v189 = vadd.f32 %v188, 0.9189385
    %v190 = vadd.f32 %v189, %v185
    %v191 = vsub.f32 %v190, %v91
    %v192 = vmul.f32 %v178, 0.003968254
    %v193 = vsub.f32 0.008333334, %v192
    %v194 = vmul.f32 %v178, %v193
    %v195 = vsub.f32 0.083333336, %v194
    %v196 = vmul.f32 %v178, %v195
    %v197 = vmul.f32 %v177, 0.5
    %v198 = vsub.f32 %v180, %v197
    %v199 = vsub.f32 %v198, %v196
    %v200 = vsub.f32 %v199, %v161
    %v201 = vadd.f32 %v73, 1.0
    %v202 = vmul.f32 %v73, %v201
    %v203 = vadd.f32 %v73, 2.0
    %v204 = vmul.f32 %v202, %v203
    %v205 = vadd.f32 %v73, 3.0
    %v206 = vmul.f32 %v204, %v205
    %v207 = vadd.f32 %v73, 4.0
    %v208 = vadd.f32 %v73, 5.0
    %v209 = vmul.f32 %v207, %v208
    %v210 = vadd.f32 %v73, 6.0
    %v211 = vmul.f32 %v209, %v210
    %v212 = vadd.f32 %v73, 7.0
    %v213 = vmul.f32 %v211, %v212
    %v214 = vlog2.pop %v206
    %v215 = vmul.f32 %v214, 0.6931472
    %v216 = vlog2.pop %v213
    %v217 = vmul.f32 %v216, 0.6931472
    %v218 = vadd.f32 %v215, %v217
    %v219 = vmul.f32 %v73, 2.0
    %v220 = vadd.f32 %v219, 1.0
    %v221 = vrcp.pop %v202
    %v222 = vmul.f32 %v202, %v221
    %v223 = vsub.f32 1.0, %v222
    %v224 = vmul.f32 %v221, %v223
    %v225 = vadd.f32 %v221, %v224
    %vm226 = vweird.f32 %v202
    %vm227 = vweird.f32 %v221
    %vm228 = vmor %vm226, %vm227
    %v229 = vsel %vm228, %v221, %v225
    %v230 = vand.u32 2147483647, %v202
    %vm231 = vcmp.eq.f32.partialorder %v230, 8.507059e+37
    %v232 = vand.u32 %v202, 2147483648
    %v233 = vor.u32 1.1754944e-38, %v232
    %v234 = vsel %vm231, %v233, %v229
    %v235 = vmul.f32 %v220, %v234
    %v236 = vadd.f32 %v219, 5.0
    %v237 = vmul.f32 %v203, %v205
    %v238 = vrcp.pop %v237
    %v239 = vmul.f32 %v237, %v238
    %v240 = vsub.f32 1.0, %v239
    %v241 = vmul.f32 %v238, %v240
    %v242 = vadd.f32 %v238, %v241
    %vm243 = vweird.f32 %v237
    %vm244 = vweird.f32 %v238
    %vm245 = vmor %vm243, %vm244
    %v246 = vsel %vm245, %v238, %v242
    %v247 = vand.u32 2147483647, %v237
    %vm248 = vcmp.eq.f32.partialorder %v247, 8.507059e+37
    %v249 = vand.u32 %v237, 2147483648
    %v250 = vor.u32 1.1754944e-38, %v249
    %v251 = vsel %vm248, %v250, %v246
    %v252 = vmul.f32 %v236, %v251
    %v253 = vadd.f32 %v235, %v252
    %v254 = vadd.f32 %v219, 9.0
    %v255 = vrcp.pop %v209
    %v256 = vmul.f32 %v209, %v255
    %v257 = vsub.f32 1.0, %v256
    %v258 = vmul.f32 %v255, %v257
    %v259 = vadd.f32 %v255, %v258
    %vm260 = vweird.f32 %v209
    %vm261 = vweird.f32 %v255
    %vm262 = vmor %vm260, %vm261
    %v263 = vsel %vm262, %v255, %v259
    %v264 = vand.u32 2147483647, %v209
    %vm265 = vcmp.eq.f32.partialorder %v264, 8.507059e+37
    %v266 = vand.u32 %v209, 2147483648
    %v267 = vor.u32 1.1754944e-38, %v266
    %v268 = vsel %vm265, %v267, %v263
    %v269 = vmul.f32 %v254, %v268
    %v270 = vadd.f32 %v253, %v269
    %v271 = vadd.f32 %v219, 13.0
    %v272 = vmul.f32 %v210, %v212
    %v273 = vrcp.pop %v272
    %v274 = vmul.f32 %v272, %v273
    %v275 = vsub.f32 1.0, %v274
    %v276 = vmul.f32 %v273, %v275
    %v277 = vadd.f32 %v273, %v276
    %vm278 = vweird.f32 %v272
    %vm279 = vweird.f32 %v273
    %vm280 = vmor %vm278, %vm279
    %v281 = vsel %vm280, %v273, %v277
    %v282 = vand.u32 2147483647, %v272
    %vm283 = vcmp.eq.f32.partialorder %v282, 8.507059e+37
    %v284 = vand.u32 %v272, 2147483648
    %v285 = vor.u32 1.1754944e-38, %v284
    %v286 = vsel %vm283, %v285, %v281
    %v287 = vmul.f32 %v271, %v286
    %v288 = vadd.f32 %v270, %v287
    %v289 = vadd.f32 %v73, 8.0
    %v290 = vrcp.pop %v289
    %v291 = vmul.f32 %v289, %v290
    %v292 = vsub.f32 1.0, %v291
    %v293 = vmul.f32 %v290, %v292
    %v294 = vadd.f32 %v290, %v293
    %vm295 = vweird.f32 %v289
    %vm296 = vweird.f32 %v290
    %vm297 = vmor %vm295, %vm296
    %v298 = vsel %vm297, %v290, %v294
    %v299 = vand.u32 2147483647, %v289
    %vm300 = vcmp.eq.f32.partialorder %v299, 8.507059e+37
    %v301 = vand.u32 %v289, 2147483648
    %v302 = vor.u32 1.1754944e-38, %v301
    %v303 = vsel %vm300, %v302, %v298
    %v304 = vmul.f32 1.0, %v303
    %v305 = vmul.f32 %v304, %v304
    %v306 = vlog2.pop %v289
    %v307 = vmul.f32 %v306, 0.6931472
    %v308 = vmul.f32 %v305, 0.0007936508
    %v309 = vadd.f32 %v308, -0.0027777778
    %v310 = vmul.f32 %v305, %v309
    %v311 = vadd.f32 %v310, 0.083333336
    %v312 = vmul.f32 %v304, %v311
    %v313 = vsub.f32 %v289, 0.5
    %v314 = vmul.f32 %v313, %v307
    %v315 = vsub.f32 %v314, %v289
    %v316 = vadd.f32 %v315, 0.9189385
    %v317 = vadd.f32 %v316, %v312
    %v318 = vsub.f32 %v317, %v218
    %v319 = vmul.f32 %v305, 0.003968254
    %v320 = vsub.f32 0.008333334, %v319
    %v321 = vmul.f32 %v305, %v320
    %v322 = vsub.f32 0.083333336, %v321
    %v323 = vmul.f32 %v305, %v322
    %v324 = vmul.f32 %v304, 0.5
    %v325 = vsub.f32 %v307, %v324
    %v326 = vsub.f32 %v325, %v323
    %v327 = vsub.f32 %v326, %v288
    %v328 = vsel %vm42, %v191, 0.0
    %v329 = vrot.slane %v328, 4
    %v330 = vadd.f32 %v328, %v329
    %v331 = vrot.slane %v330, 2
    %v332 = vadd.f32 %v330, %v331
    %v333 = vrot.slane %v332, 1
    %v334 = vadd.f32 %v332, %v333
    %v335 = vsub.f32 %v318, %v334
    %v336 = vsub.f32 %v335, 1.7917595
    %v337 = vsub.f32 %v66, 1.0
    %v338 = vsub.f32 %v200, %v327
    %v339 = vmul.f32 %v337, %v338
    %v340 = vsel %vm42, %v339, 0.0
    %v341 = vrot.slane %v340, 4
    %v342 = vadd.f32 %v340, %v341
    %v343 = vrot.slane %v342, 2
    %v344 = vadd.f32 %v342, %v343
    %v345 = vrot.slane %v344, 1
    %v346 = vadd.f32 %v344, %v345
    %v347 = vadd.f32 %v336, %v346
    %v348 = vmul.f32 %v347, 0.3
    %v349 = vadd.f32 %v62, %v348
    %350 = vst [vmem:[#allocation7] sm:$0x1] %v349
    // Predicated region
    $region18: #{tpu_custom_call.1} parent=1 // pred_check
      _
    $region19: #{tpu_custom_call.1} parent=1 // pred_check_branch
      %352 = sbr.rel (0) target = $region21
    $region20: #{tpu_custom_call.1} parent=1 // pred_region
      %354 = vsyncadd [#allocation4], 0
      %s356 = sshll.u32 [#allocation7], 4
      %s357 = int_to_ptr.vmem [resolvable:$true] %s356
      %s358 = sshll.u32 %s2, 4
      %s359 = int_to_ptr.hbm [resolvable:$true] %s358
      %361 = dma.vmem_to_hbm [thread:$0]  %s357, 16, %s359, [#allocation4]
    $region21: #{tpu_custom_call.1} parent=1 // pred_fallthru
      _
    // Predicated region
    $region22: #{tpu_custom_call.1} parent=1 // pred_check
      _
    $region23: #{tpu_custom_call.1} parent=1 // pred_check_branch
      %363 = sbr.rel (0) target = $region25
    $region24: #{tpu_custom_call.1} parent=1 // pred_region
      %365 = dma.done [#allocation4], 16
    $region25: #{tpu_custom_call.1} parent=1 // pred_fallthru
      _
    %366 = vsyncpa [#allocation3], 1
    %367 = vsyncpa [#allocation6], 1
    %368 = vsyncpa [#allocation4], 1

</llo_original>
